<compile_context>
chip_gen: v7x
topology: tpu7x:2x2x1
jax: 0.10.0
libtpu: 0.0.40
codegen_flags: <defaults>
</compile_context>

<pallas_src>
import functools

import jax
import jax.numpy as jnp
from jax import lax
from jax.experimental import pallas as pl
from jax.experimental.pallas import tpu as pltpu


# ------------------------------- Pallas kernel ------------------------------- #
def _downsample_kernel(x_ref, w_ref, b_ref, s_ref, o_ref, *,
                       rows_per_block, half_w, n_out, n_h2):
    """Fused PixelUnshuffle(2) + 1x1 conv + bias + SiLU on raw NCHW blocks.

    x_ref: (1, C, 2*rows, W)   raw input rows feeding `rows` output rows
    w_ref: (4, O, C)           w_ref[2*dy+dx][o, c] = W_full[o, 4*c + 2*dy + dx]
    b_ref: (O, 1)              conv bias (float32)
    s_ref: (W, 2*W2)           constant 0/1 even/odd lane de-interleave matrix
    o_ref: (1, O, rows, W2)    lane-dense along the image width
    """
    sel = s_ref[...]                                    # resident (W, 2*W2)
    w00 = w_ref[0]                                      # (dy=0, dx=0)
    w01 = w_ref[1]                                      # (dy=0, dx=1)
    w10 = w_ref[2]                                      # (dy=1, dx=0)
    w11 = w_ref[3]                                      # (dy=1, dx=1)
    bias = jnp.broadcast_to(b_ref[...], (n_out, half_w)).astype(jnp.float32)

    # Tail block: only process rows that exist in the real output.
    n_rows = jnp.minimum(rows_per_block,
                         n_h2 - pl.program_id(1) * rows_per_block)

    def row_body(i, carry):
        acc = bias
        for dy, w_even, w_odd in ((0, w00, w01), (1, w10, w11)):
            xrow = x_ref[0, :, 2 * i + dy, :]           # (C, W) raw input row
            # MXU de-interleave:  xd[:, :W2] = xrow[:, 0::2], xd[:, W2:] = xrow[:, 1::2]
            xd = jnp.dot(xrow, sel,
                         preferred_element_type=jnp.float32).astype(xrow.dtype)
            acc = acc + jnp.dot(w_even, xd[:, :half_w],
                                preferred_element_type=jnp.float32)
            acc = acc + jnp.dot(w_odd, xd[:, half_w:],
                                preferred_element_type=jnp.float32)
        y = acc * jax.nn.sigmoid(acc)                   # SiLU
        o_ref[0, :, i, :] = y.astype(o_ref.dtype)
        return carry

    lax.fori_loop(0, n_rows, row_body, 0)


# --------------------------- VMEM / tiling helpers --------------------------- #
def _vmem_budget_and_limit():
    """Generation-aware VMEM budget (block sizing) + explicit vmem_limit_bytes."""
    try:
        cap = int(pltpu.get_tpu_info().vmem_capacity_bytes)
    except Exception:
        cap = 64 * 1024 * 1024          # conservative fallback (v7x-sized per TC)
    cap = max(cap, 32 * 1024 * 1024)
    return cap // 2, int(cap * 0.8)


def _pick_rows_per_block(n, h2, c, o, w, itemsize, vmem_budget):
    """Output rows per grid step: as many as the VMEM budget allows (multiple of 8),
    while leaving enough grid steps for both v7x TensorCores / pipeline warm-up."""
    w2 = w // 2
    if h2 <= 8:
        return h2                                           # full extent block
    # Resident operands (weights, de-interleave matrix, bias), counted at 2 buffers.
    const_bytes = 2 * (4 * o * c + w * 2 * w2 + o) * itemsize
    # Double-buffered input / output blocks, per output row.
    per_row = 2 * (2 * c * w + o * w2) * itemsize
    # f32 loop temporaries (accumulator + de-interleaved row) + safety margin.
    tmp_bytes = 4 * (o * w2 + c * 2 * w2) * 4 + (1 << 20)
    avail = vmem_budget - const_bytes - tmp_bytes
    rows = (max(avail, 0) // per_row // 8) * 8
    rows = int(min(h2, max(8, rows)))
    # Keep both v7x TensorCores busy / amortise per-step overhead: aim for a few steps.
    min_steps = 4 if n * h2 >= 64 else (2 if n * h2 >= 16 else 1)
    while n * pl.cdiv(h2, rows) < min_steps and rows > 8:
        rows = max(8, ((rows // 2) // 8) * 8)
    return rows


def _deinterleave_matrix(w, dtype):
    """S (W, 2*W2) with S[2*w2 + dx, dx*W2 + w2] = 1 (exact 0/1 copies)."""
    w2 = w // 2
    pos = jnp.arange(w)
    cols = (pos % 2) * w2 + (pos // 2)
    return jax.nn.one_hot(cols, 2 * w2, dtype=dtype)


# ------------------------------- Module wrapper ------------------------------ #
def init_downsample_params(key, in_channels, out_channels, dtype=jnp.float32):
    """Mirror Downsample.init_conv_: kaiming-uniform (O, C), repeat 4x, zero bias."""
    o, c = out_channels, in_channels
    bound = jnp.sqrt(2.0) * jnp.sqrt(3.0 / c)               # kaiming_uniform_, a=0
    w_small = jax.random.uniform(key, (o, c), dtype=dtype, minval=-bound, maxval=bound)
    w_full = jnp.repeat(w_small, 4, axis=1)                 # 'o i -> o (i 4)'
    bias = jnp.zeros((o,), dtype=dtype)                     # zero-init (trainable)
    return w_full, bias


@jax.jit
def downsample_forward(x, w_full, bias):
    """x: (N, C, H, W) -> SiLU(Conv1x1(PixelUnshuffle(2)(x)) + bias): (N, O, H/2, W/2)."""
    n, c, h, w = x.shape
    assert h % 2 == 0 and w % 2 == 0, "spatial dims must be even"
    h2, w2 = h // 2, w // 2
    o = w_full.shape[0]
    assert w_full.shape == (o, 4 * c)

    # Per-sub-position weights: wk[2*dy+dx][o, c] = w_full[o, 4*c + 2*dy + dx]  (tiny).
    wk = jnp.transpose(w_full.reshape(o, c, 4), (2, 0, 1))
    b2 = bias.reshape(o, 1).astype(jnp.float32)
    sel = _deinterleave_matrix(w, x.dtype)

    itemsize = jnp.dtype(x.dtype).itemsize
    budget, vmem_limit = _vmem_budget_and_limit()
    rows = _pick_rows_per_block(n, h2, c, o, w, itemsize, budget)
    grid = (n, pl.cdiv(h2, rows))

    kernel = functools.partial(
        _downsample_kernel,
        rows_per_block=rows, half_w=w2, n_out=o, n_h2=h2)

    return pl.pallas_call(
        kernel,
        out_shape=jax.ShapeDtypeStruct((n, o, h2, w2), x.dtype),
        grid=grid,
        in_specs=[
            pl.BlockSpec((1, c, 2 * rows, w), lambda ni, hi: (ni, 0, hi, 0)),
            pl.BlockSpec((4, o, c), lambda ni, hi: (0, 0, 0)),
            pl.BlockSpec((o, 1), lambda ni, hi: (0, 0)),
            pl.BlockSpec((w, 2 * w2), lambda ni, hi: (0, 0)),
        ],
        out_specs=pl.BlockSpec((1, o, rows, w2), lambda ni, hi: (ni, 0, hi, 0)),
        compiler_params=pltpu.CompilerParams(
            dimension_semantics=("parallel", "parallel"),
            vmem_limit_bytes=vmem_limit),
    )(x, wk, b2, sel)


# ------------------------------ Pure-JAX reference --------------------------- #
def pixel_unshuffle_2(x):
    n, c, h, w = x.shape
    h2, w2 = h // 2, w // 2
    x = x.reshape(n, c, h2, 2, w2, 2)
    x = jnp.transpose(x, (0, 1, 3, 5, 2, 4))
    return x.reshape(n, c * 4, h2, w2)


def _reference(x, w_full, bias):
    xu = pixel_unshuffle_2(x)
    y = jnp.einsum("nkhw,ok->nohw", xu, w_full) + bias[None, :, None, None]
    return y * jax.nn.sigmoid(y)


# ------------------------------------- Main ---------------------------------- #
if __name__ == "__main__":
    key = jax.random.PRNGKey(0)
    k_x, k_w, k_w2, k_b = jax.random.split(key, 4)

    N, C, H, W = 2, 4, 16, 16
    O = 8  # out_channels

    x = jax.random.normal(k_x, (N, C, H, W), dtype=jnp.float32)

    # 1) Module exactly as initialised (repeated weight, zero bias).
    w_full, bias = init_downsample_params(k_w, C, O)
    y = jax.block_until_ready(downsample_forward(x, w_full, bias))
    ref = _reference(x, w_full, bias)
    assert y.shape == (N, O, H // 2, W // 2)
    assert jnp.allclose(y, ref, atol=1e-4, rtol=1e-4), float(jnp.max(jnp.abs(y - ref)))

    # 2) General (trained-like) weight + non-zero bias: the kernel does not rely on
    #    the 4x-repeated weight structure and applies the bias in the epilogue.
    w_gen = jax.random.normal(k_w2, (O, 4 * C), dtype=jnp.float32) * 0.2
    b_gen = jax.random.normal(k_b, (O,), dtype=jnp.float32) * 0.1
    y2 = jax.block_until_ready(downsample_forward(x, w_gen, b_gen))
    ref2 = _reference(x, w_gen, b_gen)
    assert jnp.allclose(y2, ref2, atol=1e-4, rtol=1e-4), float(jnp.max(jnp.abs(y2 - ref2)))

    print("KERNEL_OK")
</pallas_src>

<mosaic_0001>
module attributes {stable_mosaic.version = 11 : i64} {
  func.func @_downsample_kernel(%arg0: i32, %arg1: i32, %arg2: memref<1x4x16x16xf32, #tpu.memory_space<vmem>>, %arg3: memref<4x8x4xf32, #tpu.memory_space<vmem>>, %arg4: memref<8x1xf32, #tpu.memory_space<vmem>>, %arg5: memref<16x16xf32, #tpu.memory_space<vmem>>, %arg6: memref<1x8x8x8xf32, #tpu.memory_space<vmem>>) attributes {dimension_semantics = [#tpu.dimension_semantics<parallel>, #tpu.dimension_semantics<parallel>], iteration_bounds = array<i64: 2, 1>, scalar_prefetch = 0 : i64, scratch_operands = 0 : i64, tpu.core_type = #tpu.core_type<tc>, window_params = [{transform_indices = @transform_0, window_bounds = array<i64: 1, 4, 16, 16>}, {pipeline_mode = #tpu.pipeline_mode<synchronous>, transform_indices = @transform_1, window_bounds = array<i64: 4, 8, 4>}, {pipeline_mode = #tpu.pipeline_mode<synchronous>, transform_indices = @transform_2, window_bounds = array<i64: 8, 1>}, {pipeline_mode = #tpu.pipeline_mode<synchronous>, transform_indices = @transform_3, window_bounds = array<i64: 16, 16>}, {transform_indices = @transform_4, window_bounds = array<i64: 1, 8, 8, 8>}]} {
    %c0 = arith.constant 0 : index
    %c0_0 = arith.constant 0 : index
    %0 = vector.load %arg5[%c0, %c0_0] : memref<16x16xf32, #tpu.memory_space<vmem>>, vector<16x16xf32>
    %c0_1 = arith.constant 0 : index
    %c0_2 = arith.constant 0 : index
    %c0_3 = arith.constant 0 : index
    %1 = vector.load %arg3[%c0_1, %c0_2, %c0_3] : memref<4x8x4xf32, #tpu.memory_space<vmem>>, vector<1x8x4xf32>
    %2 = vector.shape_cast %1 : vector<1x8x4xf32> to vector<8x4xf32>
    %c1 = arith.constant 1 : index
    %c0_4 = arith.constant 0 : index
    %c0_5 = arith.constant 0 : index
    %3 = vector.load %arg3[%c1, %c0_4, %c0_5] : memref<4x8x4xf32, #tpu.memory_space<vmem>>, vector<1x8x4xf32>
    %4 = vector.shape_cast %3 : vector<1x8x4xf32> to vector<8x4xf32>
    %c2 = arith.constant 2 : index
    %c0_6 = arith.constant 0 : index
    %c0_7 = arith.constant 0 : index
    %5 = vector.load %arg3[%c2, %c0_6, %c0_7] : memref<4x8x4xf32, #tpu.memory_space<vmem>>, vector<1x8x4xf32>
    %6 = vector.shape_cast %5 : vector<1x8x4xf32> to vector<8x4xf32>
    %c3 = arith.constant 3 : index
    %c0_8 = arith.constant 0 : index
    %c0_9 = arith.constant 0 : index
    %7 = vector.load %arg3[%c3, %c0_8, %c0_9] : memref<4x8x4xf32, #tpu.memory_space<vmem>>, vector<1x8x4xf32>
    %8 = vector.shape_cast %7 : vector<1x8x4xf32> to vector<8x4xf32>
    %c0_10 = arith.constant 0 : index
    %c0_11 = arith.constant 0 : index
    %9 = vector.load %arg4[%c0_10, %c0_11] : memref<8x1xf32, #tpu.memory_space<vmem>>, vector<8x1xf32>
    %10 = vector.shape_cast %9 : vector<8x1xf32> to vector<8x1xf32>
    %11 = vector.broadcast %10 : vector<8x1xf32> to vector<8x8xf32>
    %c8_i32 = arith.constant 8 : i32
    %12 = arith.muli %arg1, %c8_i32 : i32
    %c8_i32_12 = arith.constant 8 : i32
    %13 = arith.subi %c8_i32_12, %12 : i32
    %c8_i32_13 = arith.constant 8 : i32
    %14 = arith.minsi %c8_i32_13, %13 : i32
    %c0_i32 = arith.constant 0 : i32
    %c0_i32_14 = arith.constant 0 : i32
    %15 = arith.subi %14, %c0_i32_14 : i32
    %16 = arith.addi %c0_i32_14, %15 : i32
    %c1_i32 = arith.constant 1 : i32
    scf.for %arg7 = %c0_i32_14 to %16 step %c1_i32  : i32 {
      %c2_i32 = arith.constant 2 : i32
      %17 = arith.muli %c2_i32, %arg7 : i32
      %c0_i32_15 = arith.constant 0 : i32
      %18 = arith.addi %17, %c0_i32_15 : i32
      %c0_16 = arith.constant 0 : index
      %c0_17 = arith.constant 0 : index
      %19 = arith.index_cast %18 : i32 to index
      %c0_18 = arith.constant 0 : index
      %20 = vector.load %arg2[%c0_16, %c0_17, %19, %c0_18] : memref<1x4x16x16xf32, #tpu.memory_space<vmem>>, vector<1x4x1x16xf32>
      %21 = vector.shape_cast %20 : vector<1x4x1x16xf32> to vector<4x16xf32>
      %cst = arith.constant dense<0.000000e+00> : vector<4x16xf32>
      %22 = tpu.matmul %21, %0, %cst {dimension_numbers = #tpu.dot_dimension_numbers<[1], [0], [0], [1], [0, 0, 1, 1], [], []>} : vector<4x16xf32>, vector<16x16xf32>, vector<4x16xf32> -> vector<4x16xf32>
      %23 = vector.extract_strided_slice %22 {offsets = [0, 0], sizes = [4, 8], strides = [1, 1]} : vector<4x16xf32> to vector<4x8xf32>
      %cst_19 = arith.constant dense<0.000000e+00> : vector<8x8xf32>
      %24 = tpu.matmul %2, %23, %cst_19 {dimension_numbers = #tpu.dot_dimension_numbers<[1], [0], [0], [1], [0, 0, 1, 1], [], []>} : vector<8x4xf32>, vector<4x8xf32>, vector<8x8xf32> -> vector<8x8xf32>
      %25 = arith.addf %11, %24 : vector<8x8xf32>
      %26 = vector.extract_strided_slice %22 {offsets = [0, 8], sizes = [4, 8], strides = [1, 1]} : vector<4x16xf32> to vector<4x8xf32>
      %cst_20 = arith.constant dense<0.000000e+00> : vector<8x8xf32>
      %27 = tpu.matmul %4, %26, %cst_20 {dimension_numbers = #tpu.dot_dimension_numbers<[1], [0], [0], [1], [0, 0, 1, 1], [], []>} : vector<8x4xf32>, vector<4x8xf32>, vector<8x8xf32> -> vector<8x8xf32>
      %28 = arith.addf %25, %27 : vector<8x8xf32>
      %c2_i32_21 = arith.constant 2 : i32
      %29 = arith.muli %c2_i32_21, %arg7 : i32
      %c1_i32_22 = arith.constant 1 : i32
      %30 = arith.addi %29, %c1_i32_22 : i32
      %c0_23 = arith.constant 0 : index
      %c0_24 = arith.constant 0 : index
      %31 = arith.index_cast %30 : i32 to index
      %c0_25 = arith.constant 0 : index
      %32 = vector.load %arg2[%c0_23, %c0_24, %31, %c0_25] : memref<1x4x16x16xf32, #tpu.memory_space<vmem>>, vector<1x4x1x16xf32>
      %33 = vector.shape_cast %32 : vector<1x4x1x16xf32> to vector<4x16xf32>
      %cst_26 = arith.constant dense<0.000000e+00> : vector<4x16xf32>
      %34 = tpu.matmul %33, %0, %cst_26 {dimension_numbers = #tpu.dot_dimension_numbers<[1], [0], [0], [1], [0, 0, 1, 1], [], []>} : vector<4x16xf32>, vector<16x16xf32>, vector<4x16xf32> -> vector<4x16xf32>
      %35 = vector.extract_strided_slice %34 {offsets = [0, 0], sizes = [4, 8], strides = [1, 1]} : vector<4x16xf32> to vector<4x8xf32>
      %cst_27 = arith.constant dense<0.000000e+00> : vector<8x8xf32>
      %36 = tpu.matmul %6, %35, %cst_27 {dimension_numbers = #tpu.dot_dimension_numbers<[1], [0], [0], [1], [0, 0, 1, 1], [], []>} : vector<8x4xf32>, vector<4x8xf32>, vector<8x8xf32> -> vector<8x8xf32>
      %37 = arith.addf %28, %36 : vector<8x8xf32>
      %38 = vector.extract_strided_slice %34 {offsets = [0, 8], sizes = [4, 8], strides = [1, 1]} : vector<4x16xf32> to vector<4x8xf32>
      %cst_28 = arith.constant dense<0.000000e+00> : vector<8x8xf32>
      %39 = tpu.matmul %8, %38, %cst_28 {dimension_numbers = #tpu.dot_dimension_numbers<[1], [0], [0], [1], [0, 0, 1, 1], [], []>} : vector<8x4xf32>, vector<4x8xf32>, vector<8x8xf32> -> vector<8x8xf32>
      %40 = arith.addf %37, %39 : vector<8x8xf32>
      %41 = arith.negf %40 : vector<8x8xf32>
      %42 = math.exp %41 : vector<8x8xf32>
      %cst_29 = arith.constant 1.000000e+00 : f32
      %43 = vector.broadcast %cst_29 : f32 to vector<8x8xf32>
      %44 = arith.addf %43, %42 : vector<8x8xf32>
      %45 = arith.divf %43, %44 : vector<8x8xf32>
      %46 = arith.mulf %40, %45 : vector<8x8xf32>
      %c0_30 = arith.constant 0 : index
      %c0_31 = arith.constant 0 : index
      %47 = arith.index_cast %arg7 : i32 to index
      %c0_32 = arith.constant 0 : index
      %48 = vector.load %arg6[%c0_30, %c0_31, %47, %c0_32] : memref<1x8x8x8xf32, #tpu.memory_space<vmem>>, vector<1x8x1x8xf32>
      %49 = vector.shape_cast %48 : vector<1x8x1x8xf32> to vector<8x8xf32>
      %50 = vector.shape_cast %46 : vector<8x8xf32> to vector<1x8x1x8xf32>
      tpu.vector_store %arg6[%c0_30, %c0_31, %47, %c0_32], %50 {strides = array<i32>} : memref<1x8x8x8xf32, #tpu.memory_space<vmem>>, vector<1x8x1x8xf32>,
    }
    return
  }
  func.func @transform_0(%arg0: i32, %arg1: i32) -> (i32, i32, i32, i32) {
    %c0_i32 = arith.constant 0 : i32
    %c0_i32_0 = arith.constant 0 : i32
    %c0_i32_1 = arith.constant 0 : i32
    return %arg0, %c0_i32, %arg1, %c0_i32_0 : i32, i32, i32, i32
  }
  func.func @transform_1(%arg0: i32, %arg1: i32) -> (i32, i32, i32) {
    %c0_i32 = arith.constant 0 : i32
    %c0_i32_0 = arith.constant 0 : i32
    %c0_i32_1 = arith.constant 0 : i32
    %c0_i32_2 = arith.constant 0 : i32
    return %c0_i32, %c0_i32_0, %c0_i32_1 : i32, i32, i32
  }
  func.func @transform_2(%arg0: i32, %arg1: i32) -> (i32, i32) {
    %c0_i32 = arith.constant 0 : i32
    %c0_i32_0 = arith.constant 0 : i32
    %c0_i32_1 = arith.constant 0 : i32
    return %c0_i32, %c0_i32_0 : i32, i32
  }
  func.func @transform_3(%arg0: i32, %arg1: i32) -> (i32, i32) {
    %c0_i32 = arith.constant 0 : i32
    %c0_i32_0 = arith.constant 0 : i32
    %c0_i32_1 = arith.constant 0 : i32
    return %c0_i32, %c0_i32_0 : i32, i32
  }
  func.func @transform_4(%arg0: i32, %arg1: i32) -> (i32, i32, i32, i32) {
    %c0_i32 = arith.constant 0 : i32
    %c0_i32_0 = arith.constant 0 : i32
    %c0_i32_1 = arith.constant 0 : i32
    return %arg0, %c0_i32, %arg1, %c0_i32_0 : i32, i32, i32, i32
  }
}

</mosaic_0001>

<llo_original>
// kernel: downsample_forward.1
$region0: #{downsample_forward.1}
  #allocation0 [shape = 'u32[]', space=smem, size = 0x4, offset = 0x4, fixed_abs, tag = 'smem constant byte address 0x4 - core index']
  #allocation1 [shape = 'u32[144,128]{1,0:T(1,128)}', space=vmem, size = 0x12000, scoped, tag = 'internal scratch']
  %s0 = inlined_call_operand.hbm [shape: f32[2,4,16,16], index: 0, kind: input, shape index: {}]
  %s1 = inlined_call_operand.vmem [shape: f32[4,8,4], index: 1, kind: input, shape index: {}]
  %s2 = inlined_call_operand.vmem [shape: f32[8,1], index: 2, kind: input, shape index: {}]
  %s3 = inlined_call_operand.vmem [shape: f32[16,16], index: 3, kind: input, shape index: {}]
  %s4 = inlined_call_operand.hbm [shape: f32[2,8,8,8], index: 4, kind: output, shape index: {}]
  %s5 = sld [smem:[#allocation0]]
  $region60: #{downsample_forward.1} parent=0
    _
  %s7 = ssub.s32 1, %s5
  %s8 = scalar_select 0, %s7, %s5
  $region1: #{downsample_forward.1} parent=0
    #allocation2 [shape = 'u8[65536]{0}', space=vmem, size = 0x10000, scoped, tag = 'input window, operand 0']
    #allocation3 [shape = 's32[2]{0}', space=sflag, size = 0x8, scoped, tag = 'scoped memory for downsample_forward.1']
    #allocation4 [shape = 's32[2]{0}', space=sflag, size = 0x8, scoped, tag = 'scoped memory for downsample_forward.1']
    #allocation5 [shape = 'u8[65536]{0}', space=vmem, size = 0x10000, scoped, tag = 'output window, operand 0']
    %9 = vsyncpa [#allocation3], 0
    %s10 = scalar_lea.sflag [#allocation3], 1
    %11 = vsyncpa %s10, 0
    %12 = vsyncpa [#allocation4], 0
    %s13 = scalar_lea.sflag [#allocation4], 1
    %14 = vsyncpa %s13, 0
    loop: start=0, step=1, limit=4
    $region2: #{downsample_forward.1} parent=1 // loop_pre_header
      _
    $region3: #{downsample_forward.1} parent=1 // loop_header
      %s16 = sphi 0, %s20
      %p17 = scmp.ge.s32.totalorder %s16, 4
      %s23 = sphi 0, %s35
      %s24 = sphi 0, %s31
      %s25 = sphi 0, %s23
      %s26 = sphi 0, %s24
      %s27 = sphi 0, %s25
      %s28 = sphi 0, %s26
      %s40 = sphi 0, %s42
      %s43 = sphi 0, %s40
      %s44 = sphi 0, %s43
      %s60 = sphi 0, %s44
      %s64 = sphi 0, %s64
      %s66 = sphi 0, %s64
      %s67 = sphi 0, %s66
      %s81 = sphi 0, %s67
      %s85 = sphi 0, %s85
      %s87 = sphi 0, %s85
      %s88 = sphi 0, %s87
      %s102 = sphi 0, %s88
      %s106 = sphi 0, %s106
      %s108 = sphi 0, %s106
      %s109 = sphi 0, %s108
      %s123 = sphi 0, %s109
      %s131 = sphi 0, %s133
      %s134 = sphi 0, %s131
      %s135 = sphi 0, %s134
      %s151 = sphi 0, %s135
    $region4: #{downsample_forward.1} parent=1 // loop_header_branch
      %19 = sbr.rel (%p17) target = $region8
    $region5: #{downsample_forward.1} parent=1 // loop_body
      %s21 = ssub.s32 %s16, 1
      %s22 = ssub.s32 %s16, 2
      %s29 = sadd.s32 1, %s24
      %p30 = scmp.ge.s32.totalorder %s29, 1
      %s31 = scalar_select %p30, 0, %s29
      %s32 = sadd.s32 1, %s23
      %s33 = scalar_select %p30, %s32, %s23
      %p34 = scmp.ge.s32.totalorder %s33, 2
      %s35 = scalar_select %p34, 0, %s33
      %s36 = ssub.s32 %s23, %s35
      %s37 = ssub.s32 %s24, %s31
      %s38 = sor.u32 %s36, %s37
      %p39 = scmp.eq.s32.totalorder %s38, 0
      %s41 = sadd.s32 %s40, 1
      %s42 = scalar_select %p39, %s40, %s41
      %p45 = pneg %p39
      %p46 = scmp.eq.s32.totalorder %s16, 1
      %p47 = por %p45, %p46
      %p48 = scmp.ne.s32.totalorder %s40, %s43
      %p49 = scmp.eq.s32.totalorder %s16, 0
      %p50 = por %p48, %p49
      %p51 = scmp.ne.s32.totalorder %s40, %s43
      %p52 = scmp.eq.s32.totalorder %s21, 1
      %p53 = por %p51, %p52
      %p54 = scmp.ne.s32.totalorder %s43, %s44
      %p55 = scmp.eq.s32.totalorder %s21, 0
      %p56 = por %p54, %p55
      %p57 = scmp.ne.s32.totalorder %s43, %s44
      %p58 = scmp.eq.s32.totalorder %s22, 1
      %p59 = por %p57, %p58
      %p61 = scmp.ne.s32.totalorder %s44, %s60
      %p62 = scmp.eq.s32.totalorder %s22, 0
      %p63 = por %p61, %p62
      %s65 = sadd.s32 %s64, 1
      %p68 = scmp.eq.s32.totalorder %s16, 1
      %p69 = scmp.ne.s32.totalorder %s64, %s66
      %p70 = scmp.eq.s32.totalorder %s16, 0
      %p71 = por %p69, %p70
      %p72 = scmp.ne.s32.totalorder %s64, %s66
      %p73 = scmp.eq.s32.totalorder %s21, 1
      %p74 = por %p72, %p73
      %p75 = scmp.ne.s32.totalorder %s66, %s67
      %p76 = scmp.eq.s32.totalorder %s21, 0
      %p77 = por %p75, %p76
      %p78 = scmp.ne.s32.totalorder %s66, %s67
      %p79 = scmp.eq.s32.totalorder %s22, 1
      %p80 = por %p78, %p79
      %p82 = scmp.ne.s32.totalorder %s67, %s81
      %p83 = scmp.eq.s32.totalorder %s22, 0
      %p84 = por %p82, %p83
      %s86 = sadd.s32 %s85, 1
      %p89 = scmp.eq.s32.totalorder %s16, 1
      %p90 = scmp.ne.s32.totalorder %s85, %s87
      %p91 = scmp.eq.s32.totalorder %s16, 0
      %p92 = por %p90, %p91
      %p93 = scmp.ne.s32.totalorder %s85, %s87
      %p94 = scmp.eq.s32.totalorder %s21, 1
      %p95 = por %p93, %p94
      %p96 = scmp.ne.s32.totalorder %s87, %s88
      %p97 = scmp.eq.s32.totalorder %s21, 0
      %p98 = por %p96, %p97
      %p99 = scmp.ne.s32.totalorder %s87, %s88
      %p100 = scmp.eq.s32.totalorder %s22, 1
      %p101 = por %p99, %p100
      %p103 = scmp.ne.s32.totalorder %s88, %s102
      %p104 = scmp.eq.s32.totalorder %s22, 0
      %p105 = por %p103, %p104
      %s107 = sadd.s32 %s106, 1
      %p110 = scmp.eq.s32.totalorder %s16, 1
      %p111 = scmp.ne.s32.totalorder %s106, %s108
      %p112 = scmp.eq.s32.totalorder %s16, 0
      %p113 = por %p111, %p112
      %p114 = scmp.ne.s32.totalorder %s106, %s108
      %p115 = scmp.eq.s32.totalorder %s21, 1
      %p116 = por %p114, %p115
      %p117 = scmp.ne.s32.totalorder %s108, %s109
      %p118 = scmp.eq.s32.totalorder %s21, 0
      %p119 = por %p117, %p118
      %p120 = scmp.ne.s32.totalorder %s108, %s109
      %p121 = scmp.eq.s32.totalorder %s22, 1
      %p122 = por %p120, %p121
      %p124 = scmp.ne.s32.totalorder %s109, %s123
      %p125 = scmp.eq.s32.totalorder %s22, 0
      %p126 = por %p124, %p125
      %s127 = ssub.s32 %s23, %s35
      %s128 = ssub.s32 %s24, %s31
      %s129 = sor.u32 %s127, %s128
      %p130 = scmp.eq.s32.totalorder %s129, 0
      %s132 = sadd.s32 %s131, 1
      %s133 = scalar_select %p130, %s131, %s132
      %p136 = pneg %p130
      %p137 = scmp.eq.s32.totalorder %s16, 1
      %p138 = por %p136, %p137
      %p139 = scmp.ne.s32.totalorder %s131, %s134
      %p140 = scmp.eq.s32.totalorder %s16, 0
      %p141 = por %p139, %p140
      %p142 = scmp.ne.s32.totalorder %s131, %s134
      %p143 = scmp.eq.s32.totalorder %s21, 1
      %p144 = por %p142, %p143
      %p145 = scmp.ne.s32.totalorder %s134, %s135
      %p146 = scmp.eq.s32.totalorder %s21, 0
      %p147 = por %p145, %p146
      %p148 = scmp.ne.s32.totalorder %s134, %s135
      %p149 = scmp.eq.s32.totalorder %s22, 1
      %p150 = por %p148, %p149
      %p152 = scmp.ne.s32.totalorder %s135, %s151
      %p153 = scmp.eq.s32.totalorder %s22, 0
      %p154 = por %p152, %p153
      %p155 = scmp.le.s32.totalorder 1, %s16
      %p156 = scmp.lt.s32.totalorder %s16, 3
      %p157 = pnand %p155, %p156
      %p158 = pneg %p157
      // Predicated region
      $region9: #{downsample_forward.1} parent=5 // pred_check
        _
      $region10: #{downsample_forward.1} parent=5 // pred_check_branch
        %160 = sbr.rel (%p157) target = $region12
      $region11: #{downsample_forward.1} parent=5 // pred_region
        %s161 = ssub.s32 %s16, 1
        // Predicated region
        $region13: #{downsample_forward.1} parent=11 // pred_check
          %p162 = pneg %p77
        $region14: #{downsample_forward.1} parent=11 // pred_check_branch
          %164 = sbr.rel (%p162) target = $region16
        $region15: #{downsample_forward.1} parent=11 // pred_region
          _
        $region16: #{downsample_forward.1} parent=11 // pred_fallthru
          _
        // Predicated region
        $region17: #{downsample_forward.1} parent=11 // pred_check
          %p165 = pneg %p98
        $region18: #{downsample_forward.1} parent=11 // pred_check_branch
          %167 = sbr.rel (%p165) target = $region20
        $region19: #{downsample_forward.1} parent=11 // pred_region
          _
        $region20: #{downsample_forward.1} parent=11 // pred_fallthru
          _
        // Predicated region
        $region21: #{downsample_forward.1} parent=11 // pred_check
          %p168 = pneg %p119
        $region22: #{downsample_forward.1} parent=11 // pred_check_branch
          %170 = sbr.rel (%p168) target = $region24
        $region23: #{downsample_forward.1} parent=11 // pred_region
          _
        $region24: #{downsample_forward.1} parent=11 // pred_fallthru
          _
      $region12: #{downsample_forward.1} parent=5 // pred_fallthru
        _
      %p171 = scmp.lt.s32.totalorder %s16, 2
      // Predicated region
      $region25: #{downsample_forward.1} parent=5 // pred_check
        %p172 = pneg %p171
      $region26: #{downsample_forward.1} parent=5 // pred_check_branch
        %174 = sbr.rel (%p172) target = $region28
      $region27: #{downsample_forward.1} parent=5 // pred_region
        // Predicated region
        $region29: #{downsample_forward.1} parent=27 // pred_check
          %p175 = pneg %p50
        $region30: #{downsample_forward.1} parent=27 // pred_check_branch
          %177 = sbr.rel (%p175) target = $region32
        $region31: #{downsample_forward.1} parent=27 // pred_region
          %s178 = sand.u32 %s40, 1
          %s179 = scalar_lea.sflag [#allocation3], %s178
          %s180 = sand.u32 %s40, 1
          %s181 = smul.addr %s180, 64
          %s182 = scalar_lea.vmem [#allocation2], %s181
          %s183 = smul.u32 2, %s24
          %s185 = ssub.s32 1024, 1024
          %186 = vsyncadd %s179, %s185
          %s187 = smul.addr %s23, 8
          %s188 = sadd.s32 %s183, %s187
          %s189 = smul.addr %s188, 128
          %s190 = scalar_lea.hbm %s0, %s189
          %s191 = sshll.u32 %s182, 4
          %s192 = int_to_ptr.vmem [resolvable:$true] %s191
          %197 = dma.hbm_to_vmem [thread:$0]  %s190, 1024, %s192, %s179, 128, 128, 8
        $region32: #{downsample_forward.1} parent=27 // pred_fallthru
          _
      $region28: #{downsample_forward.1} parent=5 // pred_fallthru
        _
      %p198 = scmp.le.s32.totalorder 1, %s16
      %p199 = scmp.lt.s32.totalorder %s16, 3
      %p200 = pnand %p198, %p199
      %p201 = pneg %p200
      // Predicated region
      $region33: #{downsample_forward.1} parent=5 // pred_check
        _
      $region34: #{downsample_forward.1} parent=5 // pred_check_branch
        %203 = sbr.rel (%p200) target = $region36
      $region35: #{downsample_forward.1} parent=5 // pred_region
        %s204 = ssub.s32 %s16, 1
        %s205 = sand.u32 %s43, 1
        %s206 = scalar_lea.sflag [#allocation3], %s205
        %s207 = sand.u32 %s43, 1
        %s208 = smul.addr %s207, 64
        %s209 = scalar_lea.vmem [#allocation2], %s208
        // Predicated region
        $region37: #{downsample_forward.1} parent=35 // pred_check
          %p210 = pneg %p56
        $region38: #{downsample_forward.1} parent=35 // pred_check_branch
          %212 = sbr.rel (%p210) target = $region40
        $region39: #{downsample_forward.1} parent=35 // pred_region
          %213 = dma.done %s206, 1024
        $region40: #{downsample_forward.1} parent=35 // pred_fallthru
          _
        %s214 = sand.u32 %s43, 1
        %s215 = scalar_lea.sflag [#allocation3], %s214
        %s216 = sand.u32 %s43, 1
        %s217 = smul.addr %s216, 64
        %s218 = scalar_lea.vmem [#allocation2], %s217
        %p219 = pneg %p56
        %p220 = pneg %p53
        %p221 = pneg %p77
        %p222 = pneg %p74
        %p223 = pneg %p98
        %p224 = pneg %p95
        %p225 = pneg %p119
        %p226 = pneg %p116
        %p227 = pneg %p147
        %p228 = pneg %p144
        %s229 = sand.u32 %s134, 1
        %s230 = scalar_lea.sflag [#allocation4], %s229
        %s231 = sand.u32 %s134, 1
        %s232 = smul.addr %s231, 64
        %s233 = scalar_lea.vmem [#allocation5], %s232
        %s234 = smul.u32 2, %s26
        %v235 = vld [vmem:[%s3] sm:$0xff]
        %v236 = vld [vmem:[%s3 + $0x8] sm:$0xff]
        %v237 = vld [vmem:[%s1] sm:$0xff]
        %s238 = scalar_lea.vmem %s1, 8
        %v239 = vld [vmem:[%s238] sm:$0xff]
        %s240 = scalar_lea.vmem %s1, 16
        %v241 = vld [vmem:[%s240] sm:$0xff]
        %s242 = scalar_lea.vmem %s1, 24
        %v243 = vld [vmem:[%s242] sm:$0xff]
        %v244 = vld [vmem:[%s2] sm:$0xff]
        %246 = vset.pattern.permute.xlu0 0
        %247 = vperm.xlu0 %246, %v244
        %v248 = vpop.permute.xlu0 %247
        %s250 = smul.u32 %s26, 8
        %s251 = ssub.s32 8, %s250
        %p252 = scmp.lt.s32.totalorder %s251, 8
        %s253 = scalar_select %p252, %s251, 8
        // While loop
        $region41: #{downsample_forward.1} parent=35 // loop_pre_header
          _
        $region42: #{downsample_forward.1} parent=35 // loop_header
          %s255 = sphi 0, %s257
          %p256 = scmp.ge.s32.totalorder %s255, %s253
        $region43: #{downsample_forward.1} parent=35 // loop_header_branch
          %259 = sbr.rel (%p256) target = $region47
        $region44: #{downsample_forward.1} parent=35 // loop_body
          %s260 = smul.u32 %s255, 2
          %s261 = scalar_lea.vmem %s209, %s260 [#allocation2]
          %v262 = vld [vmem:[%s261] sm:$0x1]
          %v263 = vld [vmem:[%s261 + $0x10] sm:$0x1]
          %v264 = vld [vmem:[%s261 + $0x20] sm:$0x1]
          %v265 = vld [vmem:[%s261 + $0x30] sm:$0x1]
          %v270 = vrot.slane %v263, 7
          %vm271 = vcmask 1041409
          %v272 = vsel %vm271, %v270, %v262
          %v273 = vrot.slane %v264, 6
          %vm274 = vcmask 1042434
          %v275 = vsel %vm274, %v273, %v272
          %v276 = vrot.slane %v265, 5
          %vm277 = vcmask 1043459
          %v278 = vsel %vm277, %v276, %v275
          %vm279 = vcmask 130048
          %v280 = vsel %vm279, %v278, 0
          %282 = vmatprep.subr.mxu0 0.0
          %283 = vmatpush1.msra.mxu0 %v235
          %284 = vmatprep.subr.mxu0 0.0
          %285 = vmatpush1.msra.mxu0 %v236
          %286 = vmatprep.subr.mxu0 0.0
          %287 = vmatpush1.msra.mxu0 0.0
          %288 = vmatprep.subr.mxu0 0.0
          %289 = vmatpush1.msra.mxu0 0.0
          %290 = vmatprep.subr.mxu0 0.0
          %291 = vmatpush1.msra.mxu0 0.0
          %292 = vmatprep.subr.mxu0 0.0
          %293 = vmatpush1.msra.mxu0 0.0
          %294 = vmatprep.subr.mxu0 0.0
          %295 = vmatpush1.msra.mxu0 0.0
          %296 = vmatprep.subr.mxu0 0.0
          %297 = vmatpush1.msra.mxu0 0.0
          %298 = vmatprep.subr.mxu0 0.0
          %299 = vmatpush1.msra.mxu0 0.0
          %300 = vmatprep.subr.mxu0 0.0
          %301 = vmatpush1.msra.mxu0 0.0
          %302 = vmatprep.subr.mxu0 0.0
          %303 = vmatpush1.msra.mxu0 0.0
          %304 = vmatprep.subr.mxu0 0.0
          %305 = vmatpush1.msra.mxu0 0.0
          %306 = vmatprep.subr.mxu0 0.0
          %307 = vmatpush1.msra.mxu0 0.0
          %308 = vmatprep.subr.mxu0 0.0
          %309 = vmatpush1.msra.mxu0 0.0
          %310 = vmatprep.subr.mxu0 0.0
          %311 = vmatpush1.msra.mxu0 0.0
          %312 = vmatprep.subr.mxu0 0.0
          %313 = vmatpush1.msra.mxu0 0.0
          %314 = vmatprep.subr.mxu0 0.0
          %315 = vmatpush1.msra.mxu0 0.0
          %316 = vmatprep.subr.mxu0 0.0
          %317 = vmatpush1.msra.mxu0 0.0
          %318 = vmatprep.subr.mxu0 0.0
          %319 = vmatpush1.msra.mxu0 0.0
          %320 = vmatprep.subr.mxu0 0.0
          %321 = vmatpush1.msra.mxu0 0.0
          %322 = vmatprep.subr.mxu0 0.0
          %323 = vmatpush1.msra.mxu0 0.0
          %324 = vmatprep.subr.mxu0 0.0
          %325 = vmatpush1.msra.mxu0 0.0
          %326 = vmatprep.subr.mxu0 0.0
          %327 = vmatpush1.msra.mxu0 0.0
          %328 = vmatprep.subr.mxu0 0.0
          %329 = vmatpush1.msra.mxu0 0.0
          %330 = vmatprep.subr.mxu0 0.0
          %331 = vmatpush1.msra.mxu0 0.0
          %332 = vmatprep.subr.mxu0 0.0
          %333 = vmatpush1.msra.mxu0 0.0
          %334 = vmatprep.subr.mxu0 0.0
          %335 = vmatpush1.msra.mxu0 0.0
          %336 = vmatprep.subr.mxu0 0.0
          %337 = vmatpush1.msra.mxu0 0.0
          %338 = vmatprep.subr.mxu0 0.0
          %339 = vmatpush1.msra.mxu0 0.0
          %340 = vmatprep.subr.mxu0 0.0
          %341 = vmatpush1.msra.mxu0 0.0
          %342 = vmatprep.subr.mxu0 0.0
          %343 = vmatpush1.msra.mxu0 0.0
          %344 = vmatprep.subr.mxu0 0.0
          %345 = vmatpush1.msra.mxu0 0.0
          %346 = vmatprep.mubr.f32.mxu0 0.0
          %347 = vmatmul.mubr.f32.gmra.mrb[0].mxu0 %v280
          %v348 = vpop.f32.mrb[0].mxu0
          %v349 = vadd.f32 0.0, %v348
          %v350 = vpop.f32.mrb[0].mxu0
          %351 = vdwg.mxu0
          %vm352 = vcmask 31744
          %v354 = vsel %vm352, %v237, 0
          %vm356 = vcmask 1043456
          %v358 = vsel %vm356, %v349, 0
          %360 = vmatprep.subr.mxu0 0.0
          %361 = vmatpush1.msra.mxu0 %v358
          %362 = vmatprep.subr.mxu0 0.0
          %363 = vmatpush1.msra.mxu0 0.0
          %364 = vmatprep.subr.mxu0 0.0
          %365 = vmatpush1.msra.mxu0 0.0
          %366 = vmatprep.subr.mxu0 0.0
          %367 = vmatpush1.msra.mxu0 0.0
          %368 = vmatprep.subr.mxu0 0.0
          %369 = vmatpush1.msra.mxu0 0.0
          %370 = vmatprep.subr.mxu0 0.0
          %371 = vmatpush1.msra.mxu0 0.0
          %372 = vmatprep.subr.mxu0 0.0
          %373 = vmatpush1.msra.mxu0 0.0
          %374 = vmatprep.subr.mxu0 0.0
          %375 = vmatpush1.msra.mxu0 0.0
          %376 = vmatprep.subr.mxu0 0.0
          %377 = vmatpush1.msra.mxu0 0.0
          %378 = vmatprep.subr.mxu0 0.0
          %379 = vmatpush1.msra.mxu0 0.0
          %380 = vmatprep.subr.mxu0 0.0
          %381 = vmatpush1.msra.mxu0 0.0
          %382 = vmatprep.subr.mxu0 0.0
          %383 = vmatpush1.msra.mxu0 0.0
          %384 = vmatprep.subr.mxu0 0.0
          %385 = vmatpush1.msra.mxu0 0.0
          %386 = vmatprep.subr.mxu0 0.0
          %387 = vmatpush1.msra.mxu0 0.0
          %388 = vmatprep.subr.mxu0 0.0
          %389 = vmatpush1.msra.mxu0 0.0
          %390 = vmatprep.subr.mxu0 0.0
          %391 = vmatpush1.msra.mxu0 0.0
          %392 = vmatprep.subr.mxu0 0.0
          %393 = vmatpush1.msra.mxu0 0.0
          %394 = vmatprep.subr.mxu0 0.0
          %395 = vmatpush1.msra.mxu0 0.0
          %396 = vmatprep.subr.mxu0 0.0
          %397 = vmatpush1.msra.mxu0 0.0
          %398 = vmatprep.subr.mxu0 0.0
          %399 = vmatpush1.msra.mxu0 0.0
          %400 = vmatprep.subr.mxu0 0.0
          %401 = vmatpush1.msra.mxu0 0.0
          %402 = vmatprep.subr.mxu0 0.0
          %403 = vmatpush1.msra.mxu0 0.0
          %404 = vmatprep.subr.mxu0 0.0
          %405 = vmatpush1.msra.mxu0 0.0
          %406 = vmatprep.subr.mxu0 0.0
          %407 = vmatpush1.msra.mxu0 0.0
          %408 = vmatprep.subr.mxu0 0.0
          %409 = vmatpush1.msra.mxu0 0.0
          %410 = vmatprep.subr.mxu0 0.0
          %411 = vmatpush1.msra.mxu0 0.0
          %412 = vmatprep.subr.mxu0 0.0
          %413 = vmatpush1.msra.mxu0 0.0
          %414 = vmatprep.subr.mxu0 0.0
          %415 = vmatpush1.msra.mxu0 0.0
          %416 = vmatprep.subr.mxu0 0.0
          %417 = vmatpush1.msra.mxu0 0.0
          %418 = vmatprep.subr.mxu0 0.0
          %419 = vmatpush1.msra.mxu0 0.0
          %420 = vmatprep.subr.mxu0 0.0
          %421 = vmatpush1.msra.mxu0 0.0
          %422 = vmatprep.subr.mxu0 0.0
          %423 = vmatpush1.msra.mxu0 0.0
          %424 = vmatprep.mubr.f32.mxu0 0.0
          %425 = vmatmul.mubr.f32.gmra.mrb[0].mxu0 %v354
          %v426 = vpop.f32.mrb[0].mxu0
          %v427 = vadd.f32 0.0, %v426
          %v428 = vpop.f32.mrb[0].mxu0
          %429 = vdwg.mxu0
          %v430 = vadd.f32 %v248, %v427
          %431 = vrot.lane.b32.xlu0 %v349, 120
          %v432 = vpop.permute.xlu0 %431
          %v434 = vsel %vm352, %v239, 0
          %v436 = vsel %vm356, %v432, 0
          %438 = vmatprep.subr.mxu0 0.0
          %439 = vmatpush1.msra.mxu0 %v436
          %440 = vmatprep.subr.mxu0 0.0
          %441 = vmatpush1.msra.mxu0 0.0
          %442 = vmatprep.subr.mxu0 0.0
          %443 = vmatpush1.msra.mxu0 0.0
          %444 = vmatprep.subr.mxu0 0.0
          %445 = vmatpush1.msra.mxu0 0.0
          %446 = vmatprep.subr.mxu0 0.0
          %447 = vmatpush1.msra.mxu0 0.0
          %448 = vmatprep.subr.mxu0 0.0
          %449 = vmatpush1.msra.mxu0 0.0
          %450 = vmatprep.subr.mxu0 0.0
          %451 = vmatpush1.msra.mxu0 0.0
          %452 = vmatprep.subr.mxu0 0.0
          %453 = vmatpush1.msra.mxu0 0.0
          %454 = vmatprep.subr.mxu0 0.0
          %455 = vmatpush1.msra.mxu0 0.0
          %456 = vmatprep.subr.mxu0 0.0
          %457 = vmatpush1.msra.mxu0 0.0
          %458 = vmatprep.subr.mxu0 0.0
          %459 = vmatpush1.msra.mxu0 0.0
          %460 = vmatprep.subr.mxu0 0.0
          %461 = vmatpush1.msra.mxu0 0.0
          %462 = vmatprep.subr.mxu0 0.0
          %463 = vmatpush1.msra.mxu0 0.0
          %464 = vmatprep.subr.mxu0 0.0
          %465 = vmatpush1.msra.mxu0 0.0
          %466 = vmatprep.subr.mxu0 0.0
          %467 = vmatpush1.msra.mxu0 0.0
          %468 = vmatprep.subr.mxu0 0.0
          %469 = vmatpush1.msra.mxu0 0.0
          %470 = vmatprep.subr.mxu0 0.0
          %471 = vmatpush1.msra.mxu0 0.0
          %472 = vmatprep.subr.mxu0 0.0
          %473 = vmatpush1.msra.mxu0 0.0
          %474 = vmatprep.subr.mxu0 0.0
          %475 = vmatpush1.msra.mxu0 0.0
          %476 = vmatprep.subr.mxu0 0.0
          %477 = vmatpush1.msra.mxu0 0.0
          %478 = vmatprep.subr.mxu0 0.0
          %479 = vmatpush1.msra.mxu0 0.0
          %480 = vmatprep.subr.mxu0 0.0
          %481 = vmatpush1.msra.mxu0 0.0
          %482 = vmatprep.subr.mxu0 0.0
          %483 = vmatpush1.msra.mxu0 0.0
          %484 = vmatprep.subr.mxu0 0.0
          %485 = vmatpush1.msra.mxu0 0.0
          %486 = vmatprep.subr.mxu0 0.0
          %487 = vmatpush1.msra.mxu0 0.0
          %488 = vmatprep.subr.mxu0 0.0
          %489 = vmatpush1.msra.mxu0 0.0
          %490 = vmatprep.subr.mxu0 0.0
          %491 = vmatpush1.msra.mxu0 0.0
          %492 = vmatprep.subr.mxu0 0.0
          %493 = vmatpush1.msra.mxu0 0.0
          %494 = vmatprep.subr.mxu0 0.0
          %495 = vmatpush1.msra.mxu0 0.0
          %496 = vmatprep.subr.mxu0 0.0
          %497 = vmatpush1.msra.mxu0 0.0
          %498 = vmatprep.subr.mxu0 0.0
          %499 = vmatpush1.msra.mxu0 0.0
          %500 = vmatprep.subr.mxu0 0.0
          %501 = vmatpush1.msra.mxu0 0.0
          %502 = vmatprep.mubr.f32.mxu0 0.0
          %503 = vmatmul.mubr.f32.gmra.mrb[0].mxu0 %v434
          %v504 = vpop.f32.mrb[0].mxu0
          %v505 = vadd.f32 0.0, %v504
          %v506 = vpop.f32.mrb[0].mxu0
          %507 = vdwg.mxu0
          %v508 = vadd.f32 %v430, %v505
          %s509 = sadd.s32 %s260, 1
          %s510 = scalar_lea.vmem %s209, %s509 [#allocation2]
          %v511 = vld [vmem:[%s510] sm:$0x1]
          %v512 = vld [vmem:[%s510 + $0x10] sm:$0x1]
          %v513 = vld [vmem:[%s510 + $0x20] sm:$0x1]
          %v514 = vld [vmem:[%s510 + $0x30] sm:$0x1]
          %v519 = vrot.slane %v512, 7
          %v520 = vsel %vm271, %v519, %v511
          %v521 = vrot.slane %v513, 6
          %v522 = vsel %vm274, %v521, %v520
          %v523 = vrot.slane %v514, 5
          %v524 = vsel %vm277, %v523, %v522
          %v525 = vsel %vm279, %v524, 0
          %527 = vmatprep.subr.mxu0 0.0
          %528 = vmatpush1.msra.mxu0 %v235
          %529 = vmatprep.subr.mxu0 0.0
          %530 = vmatpush1.msra.mxu0 %v236
          %531 = vmatprep.subr.mxu0 0.0
          %532 = vmatpush1.msra.mxu0 0.0
          %533 = vmatprep.subr.mxu0 0.0
          %534 = vmatpush1.msra.mxu0 0.0
          %535 = vmatprep.subr.mxu0 0.0
          %536 = vmatpush1.msra.mxu0 0.0
          %537 = vmatprep.subr.mxu0 0.0
          %538 = vmatpush1.msra.mxu0 0.0
          %539 = vmatprep.subr.mxu0 0.0
          %540 = vmatpush1.msra.mxu0 0.0
          %541 = vmatprep.subr.mxu0 0.0
          %542 = vmatpush1.msra.mxu0 0.0
          %543 = vmatprep.subr.mxu0 0.0
          %544 = vmatpush1.msra.mxu0 0.0
          %545 = vmatprep.subr.mxu0 0.0
          %546 = vmatpush1.msra.mxu0 0.0
          %547 = vmatprep.subr.mxu0 0.0
          %548 = vmatpush1.msra.mxu0 0.0
          %549 = vmatprep.subr.mxu0 0.0
          %550 = vmatpush1.msra.mxu0 0.0
          %551 = vmatprep.subr.mxu0 0.0
          %552 = vmatpush1.msra.mxu0 0.0
          %553 = vmatprep.subr.mxu0 0.0
          %554 = vmatpush1.msra.mxu0 0.0
          %555 = vmatprep.subr.mxu0 0.0
          %556 = vmatpush1.msra.mxu0 0.0
          %557 = vmatprep.subr.mxu0 0.0
          %558 = vmatpush1.msra.mxu0 0.0
          %559 = vmatprep.subr.mxu0 0.0
          %560 = vmatpush1.msra.mxu0 0.0
          %561 = vmatprep.subr.mxu0 0.0
          %562 = vmatpush1.msra.mxu0 0.0
          %563 = vmatprep.subr.mxu0 0.0
          %564 = vmatpush1.msra.mxu0 0.0
          %565 = vmatprep.subr.mxu0 0.0
          %566 = vmatpush1.msra.mxu0 0.0
          %567 = vmatprep.subr.mxu0 0.0
          %568 = vmatpush1.msra.mxu0 0.0
          %569 = vmatprep.subr.mxu0 0.0
          %570 = vmatpush1.msra.mxu0 0.0
          %571 = vmatprep.subr.mxu0 0.0
          %572 = vmatpush1.msra.mxu0 0.0
          %573 = vmatprep.subr.mxu0 0.0
          %574 = vmatpush1.msra.mxu0 0.0
          %575 = vmatprep.subr.mxu0 0.0
          %576 = vmatpush1.msra.mxu0 0.0
          %577 = vmatprep.subr.mxu0 0.0
          %578 = vmatpush1.msra.mxu0 0.0
          %579 = vmatprep.subr.mxu0 0.0
          %580 = vmatpush1.msra.mxu0 0.0
          %581 = vmatprep.subr.mxu0 0.0
          %582 = vmatpush1.msra.mxu0 0.0
          %583 = vmatprep.subr.mxu0 0.0
          %584 = vmatpush1.msra.mxu0 0.0
          %585 = vmatprep.subr.mxu0 0.0
          %586 = vmatpush1.msra.mxu0 0.0
          %587 = vmatprep.subr.mxu0 0.0
          %588 = vmatpush1.msra.mxu0 0.0
          %589 = vmatprep.subr.mxu0 0.0
          %590 = vmatpush1.msra.mxu0 0.0
          %591 = vmatprep.mubr.f32.mxu0 0.0
          %592 = vmatmul.mubr.f32.gmra.mrb[0].mxu0 %v525
          %v593 = vpop.f32.mrb[0].mxu0
          %v594 = vadd.f32 0.0, %v593
          %v595 = vpop.f32.mrb[0].mxu0
          %596 = vdwg.mxu0
          %v598 = vsel %vm352, %v241, 0
          %v601 = vsel %vm356, %v594, 0
          %603 = vmatprep.subr.mxu0 0.0
          %604 = vmatpush1.msra.mxu0 %v601
          %605 = vmatprep.subr.mxu0 0.0
          %606 = vmatpush1.msra.mxu0 0.0
          %607 = vmatprep.subr.mxu0 0.0
          %608 = vmatpush1.msra.mxu0 0.0
          %609 = vmatprep.subr.mxu0 0.0
          %610 = vmatpush1.msra.mxu0 0.0
          %611 = vmatprep.subr.mxu0 0.0
          %612 = vmatpush1.msra.mxu0 0.0
          %613 = vmatprep.subr.mxu0 0.0
          %614 = vmatpush1.msra.mxu0 0.0
          %615 = vmatprep.subr.mxu0 0.0
          %616 = vmatpush1.msra.mxu0 0.0
          %617 = vmatprep.subr.mxu0 0.0
          %618 = vmatpush1.msra.mxu0 0.0
          %619 = vmatprep.subr.mxu0 0.0
          %620 = vmatpush1.msra.mxu0 0.0
          %621 = vmatprep.subr.mxu0 0.0
          %622 = vmatpush1.msra.mxu0 0.0
          %623 = vmatprep.subr.mxu0 0.0
          %624 = vmatpush1.msra.mxu0 0.0
          %625 = vmatprep.subr.mxu0 0.0
          %626 = vmatpush1.msra.mxu0 0.0
          %627 = vmatprep.subr.mxu0 0.0
          %628 = vmatpush1.msra.mxu0 0.0
          %629 = vmatprep.subr.mxu0 0.0
          %630 = vmatpush1.msra.mxu0 0.0
          %631 = vmatprep.subr.mxu0 0.0
          %632 = vmatpush1.msra.mxu0 0.0
          %633 = vmatprep.subr.mxu0 0.0
          %634 = vmatpush1.msra.mxu0 0.0
          %635 = vmatprep.subr.mxu0 0.0
          %636 = vmatpush1.msra.mxu0 0.0
          %637 = vmatprep.subr.mxu0 0.0
          %638 = vmatpush1.msra.mxu0 0.0
          %639 = vmatprep.subr.mxu0 0.0
          %640 = vmatpush1.msra.mxu0 0.0
          %641 = vmatprep.subr.mxu0 0.0
          %642 = vmatpush1.msra.mxu0 0.0
          %643 = vmatprep.subr.mxu0 0.0
          %644 = vmatpush1.msra.mxu0 0.0
          %645 = vmatprep.subr.mxu0 0.0
          %646 = vmatpush1.msra.mxu0 0.0
          %647 = vmatprep.subr.mxu0 0.0
          %648 = vmatpush1.msra.mxu0 0.0
          %649 = vmatprep.subr.mxu0 0.0
          %650 = vmatpush1.msra.mxu0 0.0
          %651 = vmatprep.subr.mxu0 0.0
          %652 = vmatpush1.msra.mxu0 0.0
          %653 = vmatprep.subr.mxu0 0.0
          %654 = vmatpush1.msra.mxu0 0.0
          %655 = vmatprep.subr.mxu0 0.0
          %656 = vmatpush1.msra.mxu0 0.0
          %657 = vmatprep.subr.mxu0 0.0
          %658 = vmatpush1.msra.mxu0 0.0
          %659 = vmatprep.subr.mxu0 0.0
          %660 = vmatpush1.msra.mxu0 0.0
          %661 = vmatprep.subr.mxu0 0.0
          %662 = vmatpush1.msra.mxu0 0.0
          %663 = vmatprep.subr.mxu0 0.0
          %664 = vmatpush1.msra.mxu0 0.0
          %665 = vmatprep.subr.mxu0 0.0
          %666 = vmatpush1.msra.mxu0 0.0
          %667 = vmatprep.mubr.f32.mxu0 0.0
          %668 = vmatmul.mubr.f32.gmra.mrb[0].mxu0 %v598
          %v669 = vpop.f32.mrb[0].mxu0
          %v670 = vadd.f32 0.0, %v669
          %v671 = vpop.f32.mrb[0].mxu0
          %672 = vdwg.mxu0
          %v673 = vadd.f32 %v508, %v670
          %674 = vrot.lane.b32.xlu0 %v594, 120
          %v675 = vpop.permute.xlu0 %674
          %v677 = vsel %vm352, %v243, 0
          %v679 = vsel %vm356, %v675, 0
          %681 = vmatprep.subr.mxu0 0.0
          %682 = vmatpush1.msra.mxu0 %v679
          %683 = vmatprep.subr.mxu0 0.0
          %684 = vmatpush1.msra.mxu0 0.0
          %685 = vmatprep.subr.mxu0 0.0
          %686 = vmatpush1.msra.mxu0 0.0
          %687 = vmatprep.subr.mxu0 0.0
          %688 = vmatpush1.msra.mxu0 0.0
          %689 = vmatprep.subr.mxu0 0.0
          %690 = vmatpush1.msra.mxu0 0.0
          %691 = vmatprep.subr.mxu0 0.0
          %692 = vmatpush1.msra.mxu0 0.0
          %693 = vmatprep.subr.mxu0 0.0
          %694 = vmatpush1.msra.mxu0 0.0
          %695 = vmatprep.subr.mxu0 0.0
          %696 = vmatpush1.msra.mxu0 0.0
          %697 = vmatprep.subr.mxu0 0.0
          %698 = vmatpush1.msra.mxu0 0.0
          %699 = vmatprep.subr.mxu0 0.0
          %700 = vmatpush1.msra.mxu0 0.0
          %701 = vmatprep.subr.mxu0 0.0
          %702 = vmatpush1.msra.mxu0 0.0
          %703 = vmatprep.subr.mxu0 0.0
          %704 = vmatpush1.msra.mxu0 0.0
          %705 = vmatprep.subr.mxu0 0.0
          %706 = vmatpush1.msra.mxu0 0.0
          %707 = vmatprep.subr.mxu0 0.0
          %708 = vmatpush1.msra.mxu0 0.0
          %709 = vmatprep.subr.mxu0 0.0
          %710 = vmatpush1.msra.mxu0 0.0
          %711 = vmatprep.subr.mxu0 0.0
          %712 = vmatpush1.msra.mxu0 0.0
          %713 = vmatprep.subr.mxu0 0.0
          %714 = vmatpush1.msra.mxu0 0.0
          %715 = vmatprep.subr.mxu0 0.0
          %716 = vmatpush1.msra.mxu0 0.0
          %717 = vmatprep.subr.mxu0 0.0
          %718 = vmatpush1.msra.mxu0 0.0
          %719 = vmatprep.subr.mxu0 0.0
          %720 = vmatpush1.msra.mxu0 0.0
          %721 = vmatprep.subr.mxu0 0.0
          %722 = vmatpush1.msra.mxu0 0.0
          %723 = vmatprep.subr.mxu0 0.0
          %724 = vmatpush1.msra.mxu0 0.0
          %725 = vmatprep.subr.mxu0 0.0
          %726 = vmatpush1.msra.mxu0 0.0
          %727 = vmatprep.subr.mxu0 0.0
          %728 = vmatpush1.msra.mxu0 0.0
          %729 = vmatprep.subr.mxu0 0.0
          %730 = vmatpush1.msra.mxu0 0.0
          %731 = vmatprep.subr.mxu0 0.0
          %732 = vmatpush1.msra.mxu0 0.0
          %733 = vmatprep.subr.mxu0 0.0
          %734 = vmatpush1.msra.mxu0 0.0
          %735 = vmatprep.subr.mxu0 0.0
          %736 = vmatpush1.msra.mxu0 0.0
          %737 = vmatprep.subr.mxu0 0.0
          %738 = vmatpush1.msra.mxu0 0.0
          %739 = vmatprep.subr.mxu0 0.0
          %740 = vmatpush1.msra.mxu0 0.0
          %741 = vmatprep.subr.mxu0 0.0
          %742 = vmatpush1.msra.mxu0 0.0
          %743 = vmatprep.subr.mxu0 0.0
          %744 = vmatpush1.msra.mxu0 0.0
          %745 = vmatprep.mubr.f32.mxu0 0.0
          %746 = vmatmul.mubr.f32.gmra.mrb[0].mxu0 %v677
          %v747 = vpop.f32.mrb[0].mxu0
          %v748 = vadd.f32 0.0, %v747
          %v749 = vpop.f32.mrb[0].mxu0
          %750 = vdwg.mxu0
          %v751 = vadd.f32 %v673, %v748
          %v752 = vxor.u32 %v751, 2147483648
          %v753 = vmul.f32 %v752, 1.442695
          %v754 = vpow.pop %v753
          %v755 = vadd.f32 %v754, 1.0
          %v756 = vrcp.pop %v755
          %v757 = vmul.f32 1.0, %v756
          %v758 = vmul.f32 %v751, %v757
          %v760 = vcombine.high %v758, %v758
          %v762 = vunpack.c.l.s4 1966171168
          %v763 = vunpack.c.0.s8 %v762
          %v764 = vlaneseq
          %v765 = vshrl.u32 %v764, 7
          %v766 = vsub.s32 %v763, %v765
          %v767 = vrot.slane %v758, %v766
          %v769 = vunpack.c.l.s4 1966171168
          %v770 = vunpack.c.0.s8 %v769
          %v771 = vlaneseq
          %v772 = vshrl.u32 %v771, 7
          %v773 = vsub.s32 %v770, %v772
          %v774 = vrot.slane %v760, %v773
          %v775 = vcombine.high %v767, %v767
          %v776 = vcombine.high %v774, %v774
          %v778 = vunpack.c.l.s4 1966171168
          %v779 = vunpack.c.0.s8 %v778
          %v780 = vlaneseq
          %v781 = vshrl.u32 %v780, 7
          %v782 = vsub.s32 %v779, %v781
          %v783 = vrot.slane %v767, %v782
          %v785 = vunpack.c.l.s4 1966171168
          %v786 = vunpack.c.0.s8 %v785
          %v787 = vlaneseq
          %v788 = vshrl.u32 %v787, 7
          %v789 = vsub.s32 %v786, %v788
          %v790 = vrot.slane %v774, %v789
          %v792 = vunpack.c.l.s4 1966171168
          %v793 = vunpack.c.0.s8 %v792
          %v794 = vlaneseq
          %v795 = vshrl.u32 %v794, 7
          %v796 = vsub.s32 %v793, %v795
          %v797 = vrot.slane %v775, %v796
          %v799 = vunpack.c.l.s4 1966171168
          %v800 = vunpack.c.0.s8 %v799
          %v801 = vlaneseq
          %v802 = vshrl.u32 %v801, 7
          %v803 = vsub.s32 %v800, %v802
          %v804 = vrot.slane %v776, %v803
          %v805 = vcombine.high %v783, %v783
          %v806 = vcombine.high %v790, %v790
          %v807 = vcombine.high %v797, %v797
          %v808 = vcombine.high %v804, %v804
          %s817 = scalar_lea.vmem %s233, %s255 [#allocation5]
          %vm818 = vcmask 57344
          %819 = vst.msk [vmem:[%s817] sm:$0x1] %vm818, %v783
          %820 = vst.msk [vmem:[%s817 + $0x8] sm:$0x1] %vm818, %v797
          %821 = vst.msk [vmem:[%s817 + $0x10] sm:$0x1] %vm818, %v805
          %822 = vst.msk [vmem:[%s817 + $0x18] sm:$0x1] %vm818, %v807
          %823 = vst.msk [vmem:[%s817 + $0x20] sm:$0x1] %vm818, %v790
          %824 = vst.msk [vmem:[%s817 + $0x28] sm:$0x1] %vm818, %v804
          %825 = vst.msk [vmem:[%s817 + $0x30] sm:$0x1] %vm818, %v806
          %826 = vst.msk [vmem:[%s817 + $0x38] sm:$0x1] %vm818, %v808
        $region45: #{downsample_forward.1} parent=35 // loop_footer
          %s257 = sadd.s32 %s255, 1
        $region46: #{downsample_forward.1} parent=35 // loop_footer_branch
          %254 = sbr.rel target = $region42
        $region47: #{downsample_forward.1} parent=35 // loop_exit
          _
        %s827 = sand.u32 %s134, 1
        %s828 = scalar_lea.sflag [#allocation4], %s827
        %s829 = sand.u32 %s134, 1
        %s830 = smul.addr %s829, 64
        %s831 = scalar_lea.vmem [#allocation5], %s830
        // Predicated region
        $region48: #{downsample_forward.1} parent=35 // pred_check
          %p832 = pneg %p144
        $region49: #{downsample_forward.1} parent=35 // pred_check_branch
          %834 = sbr.rel (%p832) target = $region51
        $region50: #{downsample_forward.1} parent=35 // pred_region
          %s836 = ssub.s32 1024, 1024
          %837 = vsyncadd %s828, %s836
          %s838 = smul.addr %s25, 8
          %s839 = sadd.s32 %s26, %s838
          %s840 = smul.addr %s839, 128
          %s841 = scalar_lea.hbm %s4, %s840
          %s842 = sshll.u32 %s831, 4
          %s843 = int_to_ptr.vmem [resolvable:$true] %s842
          %848 = dma.vmem_to_hbm [thread:$0]  %s843, 1024, %s841, %s828, 128, 128, 8
        $region51: #{downsample_forward.1} parent=35 // pred_fallthru
          _
      $region36: #{downsample_forward.1} parent=5 // pred_fallthru
        _
      %p849 = scmp.le.s32.totalorder 2, %s16
      // Predicated region
      $region52: #{downsample_forward.1} parent=5 // pred_check
        %p850 = pneg %p849
      $region53: #{downsample_forward.1} parent=5 // pred_check_branch
        %852 = sbr.rel (%p850) target = $region55
      $region54: #{downsample_forward.1} parent=5 // pred_region
        %s853 = ssub.s32 %s16, 2
        // Predicated region
        $region56: #{downsample_forward.1} parent=54 // pred_check
          %p854 = pneg %p150
        $region57: #{downsample_forward.1} parent=54 // pred_check_branch
          %856 = sbr.rel (%p854) target = $region59
        $region58: #{downsample_forward.1} parent=54 // pred_region
          %s857 = sand.u32 %s135, 1
          %s858 = scalar_lea.sflag [#allocation4], %s857
          %s859 = sand.u32 %s135, 1
          %s860 = smul.addr %s859, 64
          %s861 = scalar_lea.vmem [#allocation5], %s860
          %862 = dma.done %s858, 1024
        $region59: #{downsample_forward.1} parent=54 // pred_fallthru
          _
      $region55: #{downsample_forward.1} parent=5 // pred_fallthru
        _
    $region6: #{downsample_forward.1} parent=1 // loop_footer
      %s20 = sadd.s32 1, %s16
    $region7: #{downsample_forward.1} parent=1 // loop_footer_branch
      %15 = sbr.rel target = $region3
    $region8: #{downsample_forward.1} parent=1 // loop_exit
      _
    %863 = vsyncpa [#allocation3], 1
    %s864 = scalar_lea.sflag [#allocation3], 1
    %865 = vsyncpa %s864, 1
    %866 = vsyncpa [#allocation4], 1
    %s867 = scalar_lea.sflag [#allocation4], 1
    %868 = vsyncpa %s867, 1

</llo_original>
